<compile_context>
chip_gen: v6e
topology: v6e:2x2x1
jax: 0.10.0
libtpu: 0.0.40
codegen_flags: <defaults>
</compile_context>

<pallas_src>
import functools

import jax
import jax.numpy as jnp
from jax.experimental import pallas as pl
from jax.experimental.pallas import tpu as pltpu


def highway_kernel(x_ref, w_ref, b_ref, o_ref, *, n_layers, c, matmul_dtype):
    # x_ref : (C, TL)             activation tile (channels on sublanes, positions on lanes)
    # w_ref : (n_layers, 2C, C)   fused [gate ; linear] weights, matmul_dtype
    # b_ref : (n_layers, 2C, 1)   fused [gate ; linear] biases, f32
    x = x_ref[...].astype(jnp.float32)
    for i in range(n_layers):  # n_layers is static -> unrolled
        # One fused MXU matmul per layer: (2C, C) @ (C, TL) -> (2C, TL), f32 accumulation.
        pre = jnp.dot(w_ref[i], x.astype(matmul_dtype),
                      preferred_element_type=jnp.float32) + b_ref[i]
        gate = jax.nn.sigmoid(pre[:c, :])       # EUP; static sublane slice at a 128 boundary
        nonlinear = pre[c:, :]
        # TODO(synk): dropout is identity here (eval mode); training-mode stochastic
        # dropout would use pltpu.prng_seed / pltpu.prng_random_bits.
        # gate*nl + (1-gate)*x  ==  gate*(nl - x) + x   (one fewer VPU multiply)
        x = gate * (nonlinear - x) + x
    o_ref[...] = x.astype(o_ref.dtype)


def _round_up(a, b):
    return (a + b - 1) // b * b


def highway_forward(x_ncl, w_lin, b_lin, w_gate, b_gate, *,
                    matmul_dtype=jnp.bfloat16, max_lane_blocks=8):
    """x_ncl: (N, C, L). w_*: (n_layers, C_out, C_in) kernel-size-1 conv weights.
    b_*: (n_layers, C_out). Returns (N, C, L)."""
    n_layers, c_out, c_in = w_lin.shape
    assert c_out == c_in and w_gate.shape == w_lin.shape
    N, C, L = x_ncl.shape
    assert C == c_in

    # Fuse gate + linear weights into one (n_layers, 2C, C) LHS:
    #   rows [0:C) -> gate conv, rows [C:2C) -> linear conv.  bf16 for the MXU.
    w_fused = jnp.concatenate([w_gate, w_lin], axis=1).astype(matmul_dtype)
    b_fused = jnp.concatenate([b_gate, b_lin], axis=1).astype(jnp.float32)[..., None]

    # Pad L to a multiple of 128 (lane-dense blocks, unmasked stores) and pick
    # the largest lane tile (<= 128 * max_lane_blocks) that divides L_pad.
    L_pad = _round_up(L, 128)
    m = L_pad // 128
    tl = 128
    for d in range(min(m, max_lane_blocks), 0, -1):
        if m % d == 0:
            tl = 128 * d
            break
    x_in = x_ncl if L_pad == L else jnp.pad(
        x_ncl, ((0, 0), (0, 0), (0, L_pad - L)))

    kernel = functools.partial(highway_kernel, n_layers=n_layers, c=C,
                               matmul_dtype=matmul_dtype)

    out = pl.pallas_call(
        kernel,
        out_shape=jax.ShapeDtypeStruct((N, C, L_pad), x_ncl.dtype),
        grid_spec=pltpu.PrefetchScalarGridSpec(
            num_scalar_prefetch=0,
            grid=(N, L_pad // tl),
            in_specs=[
                # Activation tile: batch dim squeezed, (C, tl) in the kernel.
                pl.BlockSpec((None, C, tl), lambda n, l: (n, 0, l)),
                # Fused weights / biases: constant index maps -> grid-invariant
                # blocks, not re-DMAed per step.
                pl.BlockSpec((n_layers, 2 * C, C), lambda n, l: (0, 0, 0)),
                pl.BlockSpec((n_layers, 2 * C, 1), lambda n, l: (0, 0, 0)),
            ],
            out_specs=pl.BlockSpec((None, C, tl), lambda n, l: (n, 0, l)),
        ),
        compiler_params=pltpu.CompilerParams(
            dimension_semantics=("parallel", "parallel")),
    )(x_in, w_fused, b_fused)

    return out if L_pad == L else out[:, :, :L]


def highway_reference(x_ncl, w_lin, b_lin, w_gate, b_gate):
    """Pure-JAX f32 reference matching the PyTorch forward (eval-mode dropout)."""
    x = x_ncl
    n_layers = w_lin.shape[0]
    for i in range(n_layers):
        gate = jax.nn.sigmoid(
            jnp.einsum("oc,ncl->nol", w_gate[i], x) + b_gate[i][None, :, None])
        nonlinear = jnp.einsum("oc,ncl->nol", w_lin[i], x) + b_lin[i][None, :, None]
        x = gate * nonlinear + (1.0 - gate) * x
    return x


def xavier_uniform(key, shape):
    # For conv1d weight (C_out, C_in, 1): fan_in = C_in, fan_out = C_out.
    fan_out, fan_in = shape[0], shape[1]
    limit = (6.0 / (fan_in + fan_out)) ** 0.5
    return jax.random.uniform(key, shape, jnp.float32, -limit, limit)


if __name__ == "__main__":
    # Module config: Highway(dropout=0.1, layer_num=2, size=128)
    N_LAYERS = 2
    SIZE = 128     # channels
    BATCH = 2
    LENGTH = 16

    key = jax.random.PRNGKey(0)
    keys = jax.random.split(key, 1 + 4 * N_LAYERS)

    x = jax.random.normal(keys[0], (BATCH, SIZE, LENGTH), jnp.float32)

    # Xavier-uniform weights and NONZERO biases so the bias path is exercised.
    w_lin = jnp.stack([xavier_uniform(keys[1 + i], (SIZE, SIZE))
                       for i in range(N_LAYERS)])
    w_gate = jnp.stack([xavier_uniform(keys[1 + N_LAYERS + i], (SIZE, SIZE))
                        for i in range(N_LAYERS)])
    b_lin = jnp.stack([0.1 * jax.random.normal(keys[1 + 2 * N_LAYERS + i], (SIZE,))
                       for i in range(N_LAYERS)])
    b_gate = jnp.stack([0.1 * jax.random.normal(keys[1 + 3 * N_LAYERS + i], (SIZE,))
                        for i in range(N_LAYERS)])

    out = highway_forward(x, w_lin, b_lin, w_gate, b_gate)
    out = jax.block_until_ready(out)

    ref = highway_reference(x, w_lin, b_lin, w_gate, b_gate)
    assert out.shape == (BATCH, SIZE, LENGTH)
    # bf16 matmul inputs with f32 accumulation: tolerance loosened vs pure-f32.
    err = float(jnp.max(jnp.abs(out - ref)))
    assert jnp.allclose(out, ref, atol=5e-2, rtol=5e-2), f"mismatch vs reference, max|err|={err}"

    print("KERNEL_OK")
</pallas_src>

<mosaic_0001>
module attributes {stable_mosaic.version = 11 : i64} {
  func.func @highway_kernel(%arg0: i32, %arg1: i32, %arg2: memref<1x128x128xf32, #tpu.memory_space<vmem>>, %arg3: memref<2x256x128xbf16, #tpu.memory_space<vmem>>, %arg4: memref<2x256x1xf32, #tpu.memory_space<vmem>>, %arg5: memref<1x128x128xf32, #tpu.memory_space<vmem>>) attributes {dimension_semantics = [#tpu.dimension_semantics<parallel>, #tpu.dimension_semantics<parallel>], iteration_bounds = array<i64: 2, 1>, scalar_prefetch = 0 : i64, scratch_operands = 0 : i64, tpu.core_type = #tpu.core_type<tc>, window_params = [{transform_indices = @transform_0, window_bounds = array<i64: 1, 128, 128>}, {pipeline_mode = #tpu.pipeline_mode<synchronous>, transform_indices = @transform_1, window_bounds = array<i64: 2, 256, 128>}, {pipeline_mode = #tpu.pipeline_mode<synchronous>, transform_indices = @transform_2, window_bounds = array<i64: 2, 256, 1>}, {transform_indices = @transform_3, window_bounds = array<i64: 1, 128, 128>}]} {
    %c0 = arith.constant 0 : index
    %c0_0 = arith.constant 0 : index
    %c0_1 = arith.constant 0 : index
    %0 = vector.load %arg2[%c0, %c0_0, %c0_1] : memref<1x128x128xf32, #tpu.memory_space<vmem>>, vector<1x128x128xf32>
    %1 = vector.shape_cast %0 : vector<1x128x128xf32> to vector<128x128xf32>
    %c0_2 = arith.constant 0 : index
    %c0_3 = arith.constant 0 : index
    %c0_4 = arith.constant 0 : index
    %2 = vector.load %arg3[%c0_2, %c0_3, %c0_4] : memref<2x256x128xbf16, #tpu.memory_space<vmem>>, vector<1x256x128xbf16>
    %3 = vector.shape_cast %2 : vector<1x256x128xbf16> to vector<256x128xbf16>
    %4 = arith.truncf %1 : vector<128x128xf32> to vector<128x128xbf16>
    %cst = arith.constant dense<0.000000e+00> : vector<256x128xf32>
    %5 = tpu.matmul %3, %4, %cst {dimension_numbers = #tpu.dot_dimension_numbers<[1], [0], [0], [1], [0, 0, 1, 1], [], []>} : vector<256x128xbf16>, vector<128x128xbf16>, vector<256x128xf32> -> vector<256x128xf32>
    %c0_5 = arith.constant 0 : index
    %c0_6 = arith.constant 0 : index
    %c0_7 = arith.constant 0 : index
    %6 = vector.load %arg4[%c0_5, %c0_6, %c0_7] : memref<2x256x1xf32, #tpu.memory_space<vmem>>, vector<1x256x1xf32>
    %7 = vector.shape_cast %6 : vector<1x256x1xf32> to vector<256x1xf32>
    %8 = vector.broadcast %7 : vector<256x1xf32> to vector<256x128xf32>
    %9 = arith.addf %5, %8 : vector<256x128xf32>
    %10 = vector.extract_strided_slice %9 {offsets = [0, 0], sizes = [128, 128], strides = [1, 1]} : vector<256x128xf32> to vector<128x128xf32>
    %11 = arith.negf %10 : vector<128x128xf32>
    %12 = math.exp %11 : vector<128x128xf32>
    %cst_8 = arith.constant 1.000000e+00 : f32
    %13 = vector.broadcast %cst_8 : f32 to vector<128x128xf32>
    %14 = arith.addf %13, %12 : vector<128x128xf32>
    %15 = arith.divf %13, %14 : vector<128x128xf32>
    %16 = vector.extract_strided_slice %9 {offsets = [128, 0], sizes = [128, 128], strides = [1, 1]} : vector<256x128xf32> to vector<128x128xf32>
    %17 = arith.subf %16, %1 : vector<128x128xf32>
    %18 = arith.mulf %15, %17 : vector<128x128xf32>
    %19 = arith.addf %18, %1 : vector<128x128xf32>
    %c1 = arith.constant 1 : index
    %c0_9 = arith.constant 0 : index
    %c0_10 = arith.constant 0 : index
    %20 = vector.load %arg3[%c1, %c0_9, %c0_10] : memref<2x256x128xbf16, #tpu.memory_space<vmem>>, vector<1x256x128xbf16>
    %21 = vector.shape_cast %20 : vector<1x256x128xbf16> to vector<256x128xbf16>
    %22 = arith.truncf %19 : vector<128x128xf32> to vector<128x128xbf16>
    %cst_11 = arith.constant dense<0.000000e+00> : vector<256x128xf32>
    %23 = tpu.matmul %21, %22, %cst_11 {dimension_numbers = #tpu.dot_dimension_numbers<[1], [0], [0], [1], [0, 0, 1, 1], [], []>} : vector<256x128xbf16>, vector<128x128xbf16>, vector<256x128xf32> -> vector<256x128xf32>
    %c1_12 = arith.constant 1 : index
    %c0_13 = arith.constant 0 : index
    %c0_14 = arith.constant 0 : index
    %24 = vector.load %arg4[%c1_12, %c0_13, %c0_14] : memref<2x256x1xf32, #tpu.memory_space<vmem>>, vector<1x256x1xf32>
    %25 = vector.shape_cast %24 : vector<1x256x1xf32> to vector<256x1xf32>
    %26 = vector.broadcast %25 : vector<256x1xf32> to vector<256x128xf32>
    %27 = arith.addf %23, %26 : vector<256x128xf32>
    %28 = vector.extract_strided_slice %27 {offsets = [0, 0], sizes = [128, 128], strides = [1, 1]} : vector<256x128xf32> to vector<128x128xf32>
    %29 = arith.negf %28 : vector<128x128xf32>
    %30 = math.exp %29 : vector<128x128xf32>
    %cst_15 = arith.constant 1.000000e+00 : f32
    %31 = vector.broadcast %cst_15 : f32 to vector<128x128xf32>
    %32 = arith.addf %31, %30 : vector<128x128xf32>
    %33 = arith.divf %31, %32 : vector<128x128xf32>
    %34 = vector.extract_strided_slice %27 {offsets = [128, 0], sizes = [128, 128], strides = [1, 1]} : vector<256x128xf32> to vector<128x128xf32>
    %35 = arith.subf %34, %19 : vector<128x128xf32>
    %36 = arith.mulf %33, %35 : vector<128x128xf32>
    %37 = arith.addf %36, %19 : vector<128x128xf32>
    %c0_16 = arith.constant 0 : index
    %c0_17 = arith.constant 0 : index
    %c0_18 = arith.constant 0 : index
    %38 = vector.load %arg5[%c0_16, %c0_17, %c0_18] : memref<1x128x128xf32, #tpu.memory_space<vmem>>, vector<1x128x128xf32>
    %39 = vector.shape_cast %38 : vector<1x128x128xf32> to vector<128x128xf32>
    %40 = vector.shape_cast %37 : vector<128x128xf32> to vector<1x128x128xf32>
    tpu.vector_store %arg5[%c0_16, %c0_17, %c0_18], %40 {strides = array<i32>} : memref<1x128x128xf32, #tpu.memory_space<vmem>>, vector<1x128x128xf32>,
    return
  }
  func.func @transform_0(%arg0: i32, %arg1: i32) -> (i32, i32, i32) {
    %c0_i32 = arith.constant 0 : i32
    %c0_i32_0 = arith.constant 0 : i32
    return %arg0, %c0_i32, %arg1 : i32, i32, i32
  }
  func.func @transform_1(%arg0: i32, %arg1: i32) -> (i32, i32, i32) {
    %c0_i32 = arith.constant 0 : i32
    %c0_i32_0 = arith.constant 0 : i32
    %c0_i32_1 = arith.constant 0 : i32
    %c0_i32_2 = arith.constant 0 : i32
    return %c0_i32, %c0_i32_0, %c0_i32_1 : i32, i32, i32
  }
  func.func @transform_2(%arg0: i32, %arg1: i32) -> (i32, i32, i32) {
    %c0_i32 = arith.constant 0 : i32
    %c0_i32_0 = arith.constant 0 : i32
    %c0_i32_1 = arith.constant 0 : i32
    %c0_i32_2 = arith.constant 0 : i32
    return %c0_i32, %c0_i32_0, %c0_i32_1 : i32, i32, i32
  }
  func.func @transform_3(%arg0: i32, %arg1: i32) -> (i32, i32, i32) {
    %c0_i32 = arith.constant 0 : i32
    %c0_i32_0 = arith.constant 0 : i32
    return %arg0, %c0_i32, %arg1 : i32, i32, i32
  }
}

</mosaic_0001>

<llo_original>
// kernel: tpu_custom_call.1
$region0: #{tpu_custom_call.1}
  #allocation0 [shape = 'u32[]', space=smem, size = 0x4, offset = 0x4, fixed_abs, tag = 'smem constant byte address 0x4 - core index']
  #allocation1 [shape = 'u32[144,128]{1,0:T(1,128)}', space=vmem, size = 0x12000, scoped, tag = 'internal scratch']
  %s0 = inlined_call_operand.vmem [shape: f32[2,128,128], index: 0, kind: input, shape index: {}]
  %s1 = inlined_call_operand.vmem [shape: bf16[2,256,128], index: 1, kind: input, shape index: {}]
  %s2 = inlined_call_operand.vmem [shape: f32[2,256,1], index: 2, kind: input, shape index: {}]
  %s3 = inlined_call_operand.hbm [shape: f32[2,128,128], index: 3, kind: output, shape index: {}]
  %s4 = sld [smem:[#allocation0]]
  $region45: #{tpu_custom_call.1} parent=0
    _
  %s6 = ssub.s32 1, %s4
  %s7 = scalar_select 0, %s6, %s4
  $region1: #{tpu_custom_call.1} parent=0
    #allocation2 [shape = 'u8[131072]{0}', space=vmem, size = 0x20000, scoped, tag = 'output window, operand 0']
    #allocation3 [shape = 's32[2]{0}', space=sflag, size = 0x8, scoped, tag = 'scoped memory for tpu_custom_call.1']
    %8 = vsyncpa [#allocation3], 0
    %s9 = scalar_lea.sflag [#allocation3], 1
    %10 = vsyncpa %s9, 0
    loop: start=0, step=1, limit=4
    $region2: #{tpu_custom_call.1} parent=1 // loop_pre_header
      _
    $region3: #{tpu_custom_call.1} parent=1 // loop_header
      %s12 = sphi 0, %s16
      %p13 = scmp.ge.s32.totalorder %s12, 4
      %s19 = sphi 0, %s31
      %s20 = sphi 0, %s27
      %s21 = sphi 0, %s19
      %s22 = sphi 0, %s20
      %s23 = sphi 0, %s21
      %s24 = sphi 0, %s22
      %s36 = sphi 0, %s38
      %s39 = sphi 0, %s36
      %s40 = sphi 0, %s39
      %s56 = sphi 0, %s40
      %s60 = sphi 0, %s60
      %s62 = sphi 0, %s60
      %s63 = sphi 0, %s62
      %s77 = sphi 0, %s63
      %s81 = sphi 0, %s81
      %s83 = sphi 0, %s81
      %s84 = sphi 0, %s83
      %s98 = sphi 0, %s84
      %s106 = sphi 0, %s108
      %s109 = sphi 0, %s106
      %s110 = sphi 0, %s109
      %s126 = sphi 0, %s110
    $region4: #{tpu_custom_call.1} parent=1 // loop_header_branch
      %15 = sbr.rel (%p13) target = $region8
    $region5: #{tpu_custom_call.1} parent=1 // loop_body
      %s17 = ssub.s32 %s12, 1
      %s18 = ssub.s32 %s12, 2
      %s25 = sadd.s32 1, %s20
      %p26 = scmp.ge.s32.totalorder %s25, 1
      %s27 = scalar_select %p26, 0, %s25
      %s28 = sadd.s32 1, %s19
      %s29 = scalar_select %p26, %s28, %s19
      %p30 = scmp.ge.s32.totalorder %s29, 2
      %s31 = scalar_select %p30, 0, %s29
      %s32 = ssub.s32 %s19, %s31
      %s33 = ssub.s32 %s20, %s27
      %s34 = sor.u32 %s32, %s33
      %p35 = scmp.eq.s32.totalorder %s34, 0
      %s37 = sadd.s32 %s36, 1
      %s38 = scalar_select %p35, %s36, %s37
      %p41 = pneg %p35
      %p42 = scmp.eq.s32.totalorder %s12, 1
      %p43 = por %p41, %p42
      %p44 = scmp.ne.s32.totalorder %s36, %s39
      %p45 = scmp.eq.s32.totalorder %s12, 0
      %p46 = por %p44, %p45
      %p47 = scmp.ne.s32.totalorder %s36, %s39
      %p48 = scmp.eq.s32.totalorder %s17, 1
      %p49 = por %p47, %p48
      %p50 = scmp.ne.s32.totalorder %s39, %s40
      %p51 = scmp.eq.s32.totalorder %s17, 0
      %p52 = por %p50, %p51
      %p53 = scmp.ne.s32.totalorder %s39, %s40
      %p54 = scmp.eq.s32.totalorder %s18, 1
      %p55 = por %p53, %p54
      %p57 = scmp.ne.s32.totalorder %s40, %s56
      %p58 = scmp.eq.s32.totalorder %s18, 0
      %p59 = por %p57, %p58
      %s61 = sadd.s32 %s60, 1
      %p64 = scmp.eq.s32.totalorder %s12, 1
      %p65 = scmp.ne.s32.totalorder %s60, %s62
      %p66 = scmp.eq.s32.totalorder %s12, 0
      %p67 = por %p65, %p66
      %p68 = scmp.ne.s32.totalorder %s60, %s62
      %p69 = scmp.eq.s32.totalorder %s17, 1
      %p70 = por %p68, %p69
      %p71 = scmp.ne.s32.totalorder %s62, %s63
      %p72 = scmp.eq.s32.totalorder %s17, 0
      %p73 = por %p71, %p72
      %p74 = scmp.ne.s32.totalorder %s62, %s63
      %p75 = scmp.eq.s32.totalorder %s18, 1
      %p76 = por %p74, %p75
      %p78 = scmp.ne.s32.totalorder %s63, %s77
      %p79 = scmp.eq.s32.totalorder %s18, 0
      %p80 = por %p78, %p79
      %s82 = sadd.s32 %s81, 1
      %p85 = scmp.eq.s32.totalorder %s12, 1
      %p86 = scmp.ne.s32.totalorder %s81, %s83
      %p87 = scmp.eq.s32.totalorder %s12, 0
      %p88 = por %p86, %p87
      %p89 = scmp.ne.s32.totalorder %s81, %s83
      %p90 = scmp.eq.s32.totalorder %s17, 1
      %p91 = por %p89, %p90
      %p92 = scmp.ne.s32.totalorder %s83, %s84
      %p93 = scmp.eq.s32.totalorder %s17, 0
      %p94 = por %p92, %p93
      %p95 = scmp.ne.s32.totalorder %s83, %s84
      %p96 = scmp.eq.s32.totalorder %s18, 1
      %p97 = por %p95, %p96
      %p99 = scmp.ne.s32.totalorder %s84, %s98
      %p100 = scmp.eq.s32.totalorder %s18, 0
      %p101 = por %p99, %p100
      %s102 = ssub.s32 %s19, %s31
      %s103 = ssub.s32 %s20, %s27
      %s104 = sor.u32 %s102, %s103
      %p105 = scmp.eq.s32.totalorder %s104, 0
      %s107 = sadd.s32 %s106, 1
      %s108 = scalar_select %p105, %s106, %s107
      %p111 = pneg %p105
      %p112 = scmp.eq.s32.totalorder %s12, 1
      %p113 = por %p111, %p112
      %p114 = scmp.ne.s32.totalorder %s106, %s109
      %p115 = scmp.eq.s32.totalorder %s12, 0
      %p116 = por %p114, %p115
      %p117 = scmp.ne.s32.totalorder %s106, %s109
      %p118 = scmp.eq.s32.totalorder %s17, 1
      %p119 = por %p117, %p118
      %p120 = scmp.ne.s32.totalorder %s109, %s110
      %p121 = scmp.eq.s32.totalorder %s17, 0
      %p122 = por %p120, %p121
      %p123 = scmp.ne.s32.totalorder %s109, %s110
      %p124 = scmp.eq.s32.totalorder %s18, 1
      %p125 = por %p123, %p124
      %p127 = scmp.ne.s32.totalorder %s110, %s126
      %p128 = scmp.eq.s32.totalorder %s18, 0
      %p129 = por %p127, %p128
      %p130 = scmp.le.s32.totalorder 1, %s12
      %p131 = scmp.lt.s32.totalorder %s12, 3
      %p132 = pnand %p130, %p131
      %p133 = pneg %p132
      // Predicated region
      $region9: #{tpu_custom_call.1} parent=5 // pred_check
        _
      $region10: #{tpu_custom_call.1} parent=5 // pred_check_branch
        %135 = sbr.rel (%p132) target = $region12
      $region11: #{tpu_custom_call.1} parent=5 // pred_region
        %s136 = ssub.s32 %s12, 1
        // Predicated region
        $region13: #{tpu_custom_call.1} parent=11 // pred_check
          %p137 = pneg %p73
        $region14: #{tpu_custom_call.1} parent=11 // pred_check_branch
          %139 = sbr.rel (%p137) target = $region16
        $region15: #{tpu_custom_call.1} parent=11 // pred_region
          _
        $region16: #{tpu_custom_call.1} parent=11 // pred_fallthru
          _
        // Predicated region
        $region17: #{tpu_custom_call.1} parent=11 // pred_check
          %p140 = pneg %p94
        $region18: #{tpu_custom_call.1} parent=11 // pred_check_branch
          %142 = sbr.rel (%p140) target = $region20
        $region19: #{tpu_custom_call.1} parent=11 // pred_region
          _
        $region20: #{tpu_custom_call.1} parent=11 // pred_fallthru
          _
      $region12: #{tpu_custom_call.1} parent=5 // pred_fallthru
        _
      %p143 = scmp.lt.s32.totalorder %s12, 2
      // Predicated region
      $region21: #{tpu_custom_call.1} parent=5 // pred_check
        %p144 = pneg %p143
      $region22: #{tpu_custom_call.1} parent=5 // pred_check_branch
        %146 = sbr.rel (%p144) target = $region24
      $region23: #{tpu_custom_call.1} parent=5 // pred_region
        // Predicated region
        $region25: #{tpu_custom_call.1} parent=23 // pred_check
          %p147 = pneg %p46
        $region26: #{tpu_custom_call.1} parent=23 // pred_check_branch
          %149 = sbr.rel (%p147) target = $region28
        $region27: #{tpu_custom_call.1} parent=23 // pred_region
          %p150 = scmp.lt.s32.totalorder %s19, 1
          %s151 = scalar_select %p150, %s19, 1
          %p152 = scmp.lt.s32.totalorder %s20, 0
          %s153 = scalar_select %p152, %s20, 0
          %s154 = smul.addr %s151, 16
          %s155 = sadd.s32 %s153, %s154
          %s156 = smul.addr %s155, 8
          %s157 = scalar_lea.vmem %s0, %s156
        $region28: #{tpu_custom_call.1} parent=23 // pred_fallthru
          _
      $region24: #{tpu_custom_call.1} parent=5 // pred_fallthru
        _
      %p158 = scmp.le.s32.totalorder 1, %s12
      %p159 = scmp.lt.s32.totalorder %s12, 3
      %p160 = pnand %p158, %p159
      %p161 = pneg %p160
      // Predicated region
      $region29: #{tpu_custom_call.1} parent=5 // pred_check
        _
      $region30: #{tpu_custom_call.1} parent=5 // pred_check_branch
        %163 = sbr.rel (%p160) target = $region32
      $region31: #{tpu_custom_call.1} parent=5 // pred_region
        %s164 = ssub.s32 %s12, 1
        %p165 = scmp.lt.s32.totalorder %s21, 1
        %s166 = scalar_select %p165, %s21, 1
        %p167 = scmp.lt.s32.totalorder %s22, 0
        %s168 = scalar_select %p167, %s22, 0
        %s169 = smul.addr %s166, 16
        %s170 = sadd.s32 %s168, %s169
        %s171 = smul.addr %s170, 8
        %s172 = scalar_lea.vmem %s0, %s171
        %p173 = pneg %p52
        %p174 = pneg %p49
        %p175 = pneg %p73
        %p176 = pneg %p70
        %p177 = pneg %p94
        %p178 = pneg %p91
        %p179 = pneg %p122
        %p180 = pneg %p119
        %s181 = sand.u32 %s109, 1
        %s182 = scalar_lea.sflag [#allocation3], %s181
        %s183 = sand.u32 %s109, 1
        %s184 = smul.addr %s183, 128
        %s185 = scalar_lea.vmem [#allocation2], %s184
        %p186 = scmp.lt.s32.totalorder %s21, 1
        %s187 = scalar_select %p186, %s21, 1
        %p188 = scmp.lt.s32.totalorder %s22, 0
        %s189 = scalar_select %p188, %s22, 0
        %s190 = smul.addr %s187, 16
        %s191 = sadd.s32 %s189, %s190
        %s192 = smul.addr %s191, 8
        %s193 = scalar_lea.vmem %s0, %s192
        %v195 = vld [vmem:[%s193] sm:$0xff]
        %v196 = vld [vmem:[%s193 + $0x8] sm:$0xff]
        %v197 = vld [vmem:[%s193 + $0x10] sm:$0xff]
        %v198 = vld [vmem:[%s193 + $0x18] sm:$0xff]
        %v199 = vld [vmem:[%s193 + $0x20] sm:$0xff]
        %v200 = vld [vmem:[%s193 + $0x28] sm:$0xff]
        %v201 = vld [vmem:[%s193 + $0x30] sm:$0xff]
        %v202 = vld [vmem:[%s193 + $0x38] sm:$0xff]
        %v203 = vld [vmem:[%s193 + $0x40] sm:$0xff]
        %v204 = vld [vmem:[%s193 + $0x48] sm:$0xff]
        %v205 = vld [vmem:[%s193 + $0x50] sm:$0xff]
        %v206 = vld [vmem:[%s193 + $0x58] sm:$0xff]
        %v207 = vld [vmem:[%s193 + $0x60] sm:$0xff]
        %v208 = vld [vmem:[%s193 + $0x68] sm:$0xff]
        %v209 = vld [vmem:[%s193 + $0x70] sm:$0xff]
        %v210 = vld [vmem:[%s193 + $0x78] sm:$0xff]
        %v211 = vld [vmem:[%s1] sm:$0xf]
        %v212 = vld [vmem:[%s1 + $0x4] sm:$0xf]
        %v213 = vld [vmem:[%s1 + $0x8] sm:$0xf]
        %v214 = vld [vmem:[%s1 + $0xc] sm:$0xf]
        %v215 = vld [vmem:[%s1 + $0x10] sm:$0xf]
        %v216 = vld [vmem:[%s1 + $0x14] sm:$0xf]
        %v217 = vld [vmem:[%s1 + $0x18] sm:$0xf]
        %v218 = vld [vmem:[%s1 + $0x1c] sm:$0xf]
        %v219 = vld [vmem:[%s1 + $0x20] sm:$0xf]
        %v220 = vld [vmem:[%s1 + $0x24] sm:$0xf]
        %v221 = vld [vmem:[%s1 + $0x28] sm:$0xf]
        %v222 = vld [vmem:[%s1 + $0x2c] sm:$0xf]
        %v223 = vld [vmem:[%s1 + $0x30] sm:$0xf]
        %v224 = vld [vmem:[%s1 + $0x34] sm:$0xf]
        %v225 = vld [vmem:[%s1 + $0x38] sm:$0xf]
        %v226 = vld [vmem:[%s1 + $0x3c] sm:$0xf]
        %v227 = vld [vmem:[%s1 + $0x40] sm:$0xf]
        %v228 = vld [vmem:[%s1 + $0x44] sm:$0xf]
        %v229 = vld [vmem:[%s1 + $0x48] sm:$0xf]
        %v230 = vld [vmem:[%s1 + $0x4c] sm:$0xf]
        %v231 = vld [vmem:[%s1 + $0x50] sm:$0xf]
        %v232 = vld [vmem:[%s1 + $0x54] sm:$0xf]
        %v233 = vld [vmem:[%s1 + $0x58] sm:$0xf]
        %v234 = vld [vmem:[%s1 + $0x5c] sm:$0xf]
        %v235 = vld [vmem:[%s1 + $0x60] sm:$0xf]
        %v236 = vld [vmem:[%s1 + $0x64] sm:$0xf]
        %v237 = vld [vmem:[%s1 + $0x68] sm:$0xf]
        %v238 = vld [vmem:[%s1 + $0x6c] sm:$0xf]
        %v239 = vld [vmem:[%s1 + $0x70] sm:$0xf]
        %v240 = vld [vmem:[%s1 + $0x74] sm:$0xf]
        %v241 = vld [vmem:[%s1 + $0x78] sm:$0xf]
        %v242 = vld [vmem:[%s1 + $0x7c] sm:$0xf]
        %v243 = vpack.c.bf16 %v196, %v195
        %v244 = vpack.c.bf16 %v198, %v197
        %v245 = vpack.c.bf16 %v200, %v199
        %v246 = vpack.c.bf16 %v202, %v201
        %v247 = vpack.c.bf16 %v204, %v203
        %v248 = vpack.c.bf16 %v206, %v205
        %v249 = vpack.c.bf16 %v208, %v207
        %v250 = vpack.c.bf16 %v210, %v209
        %v251 = vld [vmem:[%s2] sm:$0xff]
        %v252 = vld [vmem:[%s2 + $0x8] sm:$0xff]
        %v253 = vld [vmem:[%s2 + $0x10] sm:$0xff]
        %v254 = vld [vmem:[%s2 + $0x18] sm:$0xff]
        %v255 = vld [vmem:[%s2 + $0x20] sm:$0xff]
        %v256 = vld [vmem:[%s2 + $0x28] sm:$0xff]
        %v257 = vld [vmem:[%s2 + $0x30] sm:$0xff]
        %v258 = vld [vmem:[%s2 + $0x38] sm:$0xff]
        %v259 = vld [vmem:[%s2 + $0x40] sm:$0xff]
        %v260 = vld [vmem:[%s2 + $0x48] sm:$0xff]
        %v261 = vld [vmem:[%s2 + $0x50] sm:$0xff]
        %v262 = vld [vmem:[%s2 + $0x58] sm:$0xff]
        %v263 = vld [vmem:[%s2 + $0x60] sm:$0xff]
        %v264 = vld [vmem:[%s2 + $0x68] sm:$0xff]
        %v265 = vld [vmem:[%s2 + $0x70] sm:$0xff]
        %v266 = vld [vmem:[%s2 + $0x78] sm:$0xff]
        %v267 = vld [vmem:[%s2 + $0x80] sm:$0xff]
        %v268 = vld [vmem:[%s2 + $0x88] sm:$0xff]
        %v269 = vld [vmem:[%s2 + $0x90] sm:$0xff]
        %v270 = vld [vmem:[%s2 + $0x98] sm:$0xff]
        %v271 = vld [vmem:[%s2 + $0xa0] sm:$0xff]
        %v272 = vld [vmem:[%s2 + $0xa8] sm:$0xff]
        %v273 = vld [vmem:[%s2 + $0xb0] sm:$0xff]
        %v274 = vld [vmem:[%s2 + $0xb8] sm:$0xff]
        %v275 = vld [vmem:[%s2 + $0xc0] sm:$0xff]
        %v276 = vld [vmem:[%s2 + $0xc8] sm:$0xff]
        %v277 = vld [vmem:[%s2 + $0xd0] sm:$0xff]
        %v278 = vld [vmem:[%s2 + $0xd8] sm:$0xff]
        %v279 = vld [vmem:[%s2 + $0xe0] sm:$0xff]
        %v280 = vld [vmem:[%s2 + $0xe8] sm:$0xff]
        %v281 = vld [vmem:[%s2 + $0xf0] sm:$0xff]
        %v282 = vld [vmem:[%s2 + $0xf8] sm:$0xff]
        %284 = vset.pattern.permute.xlu0 0
        %285 = vperm.xlu0 %284, %v251
        %v286 = vpop.permute.xlu0 %285
        %289 = vset.pattern.permute.xlu0 0
        %290 = vperm.xlu0 %289, %v252
        %v291 = vpop.permute.xlu0 %290
        %294 = vset.pattern.permute.xlu0 0
        %295 = vperm.xlu0 %294, %v253
        %v296 = vpop.permute.xlu0 %295
        %299 = vset.pattern.permute.xlu0 0
        %300 = vperm.xlu0 %299, %v254
        %v301 = vpop.permute.xlu0 %300
        %304 = vset.pattern.permute.xlu0 0
        %305 = vperm.xlu0 %304, %v255
        %v306 = vpop.permute.xlu0 %305
        %309 = vset.pattern.permute.xlu0 0
        %310 = vperm.xlu0 %309, %v256
        %v311 = vpop.permute.xlu0 %310
        %314 = vset.pattern.permute.xlu0 0
        %315 = vperm.xlu0 %314, %v257
        %v316 = vpop.permute.xlu0 %315
        %319 = vset.pattern.permute.xlu0 0
        %320 = vperm.xlu0 %319, %v258
        %v321 = vpop.permute.xlu0 %320
        %324 = vset.pattern.permute.xlu0 0
        %325 = vperm.xlu0 %324, %v259
        %v326 = vpop.permute.xlu0 %325
        %329 = vset.pattern.permute.xlu0 0
        %330 = vperm.xlu0 %329, %v260
        %v331 = vpop.permute.xlu0 %330
        %334 = vset.pattern.permute.xlu0 0
        %335 = vperm.xlu0 %334, %v261
        %v336 = vpop.permute.xlu0 %335
        %339 = vset.pattern.permute.xlu0 0
        %340 = vperm.xlu0 %339, %v262
        %v341 = vpop.permute.xlu0 %340
        %344 = vset.pattern.permute.xlu0 0
        %345 = vperm.xlu0 %344, %v263
        %v346 = vpop.permute.xlu0 %345
        %349 = vset.pattern.permute.xlu0 0
        %350 = vperm.xlu0 %349, %v264
        %v351 = vpop.permute.xlu0 %350
        %354 = vset.pattern.permute.xlu0 0
        %355 = vperm.xlu0 %354, %v265
        %v356 = vpop.permute.xlu0 %355
        %359 = vset.pattern.permute.xlu0 0
        %360 = vperm.xlu0 %359, %v266
        %v361 = vpop.permute.xlu0 %360
        %364 = vset.pattern.permute.xlu0 0
        %365 = vperm.xlu0 %364, %v267
        %v366 = vpop.permute.xlu0 %365
        %369 = vset.pattern.permute.xlu0 0
        %370 = vperm.xlu0 %369, %v268
        %v371 = vpop.permute.xlu0 %370
        %374 = vset.pattern.permute.xlu0 0
        %375 = vperm.xlu0 %374, %v269
        %v376 = vpop.permute.xlu0 %375
        %379 = vset.pattern.permute.xlu0 0
        %380 = vperm.xlu0 %379, %v270
        %v381 = vpop.permute.xlu0 %380
        %384 = vset.pattern.permute.xlu0 0
        %385 = vperm.xlu0 %384, %v271
        %v386 = vpop.permute.xlu0 %385
        %389 = vset.pattern.permute.xlu0 0
        %390 = vperm.xlu0 %389, %v272
        %v391 = vpop.permute.xlu0 %390
        %394 = vset.pattern.permute.xlu0 0
        %395 = vperm.xlu0 %394, %v273
        %v396 = vpop.permute.xlu0 %395
        %399 = vset.pattern.permute.xlu0 0
        %400 = vperm.xlu0 %399, %v274
        %v401 = vpop.permute.xlu0 %400
        %404 = vset.pattern.permute.xlu0 0
        %405 = vperm.xlu0 %404, %v275
        %v406 = vpop.permute.xlu0 %405
        %409 = vset.pattern.permute.xlu0 0
        %410 = vperm.xlu0 %409, %v276
        %v411 = vpop.permute.xlu0 %410
        %414 = vset.pattern.permute.xlu0 0
        %415 = vperm.xlu0 %414, %v277
        %v416 = vpop.permute.xlu0 %415
        %419 = vset.pattern.permute.xlu0 0
        %420 = vperm.xlu0 %419, %v278
        %v421 = vpop.permute.xlu0 %420
        %424 = vset.pattern.permute.xlu0 0
        %425 = vperm.xlu0 %424, %v279
        %v426 = vpop.permute.xlu0 %425
        %429 = vset.pattern.permute.xlu0 0
        %430 = vperm.xlu0 %429, %v280
        %v431 = vpop.permute.xlu0 %430
        %434 = vset.pattern.permute.xlu0 0
        %435 = vperm.xlu0 %434, %v281
        %v436 = vpop.permute.xlu0 %435
        %439 = vset.pattern.permute.xlu0 0
        %440 = vperm.xlu0 %439, %v282
        %v441 = vpop.permute.xlu0 %440
        %v475 = vunpack.c.l.b16 %v211
        %v476 = vunpack.c.l.b16 %v212
        %v477 = vunpack.c.l.b16 %v213
        %v478 = vunpack.c.l.b16 %v214
        %v479 = vunpack.c.l.b16 %v215
        %v480 = vunpack.c.l.b16 %v216
        %v481 = vunpack.c.l.b16 %v217
        %v482 = vunpack.c.l.b16 %v218
        %v483 = vunpack.c.l.b16 %v219
        %v484 = vunpack.c.l.b16 %v220
        %v485 = vunpack.c.l.b16 %v221
        %v486 = vunpack.c.l.b16 %v222
        %v487 = vunpack.c.l.b16 %v223
        %v488 = vunpack.c.l.b16 %v224
        %v489 = vunpack.c.l.b16 %v225
        %v490 = vunpack.c.l.b16 %v226
        %v491 = vunpack.c.l.b16 %v227
        %v492 = vunpack.c.l.b16 %v228
        %v493 = vunpack.c.l.b16 %v229
        %v494 = vunpack.c.l.b16 %v230
        %v495 = vunpack.c.l.b16 %v231
        %v496 = vunpack.c.l.b16 %v232
        %v497 = vunpack.c.l.b16 %v233
        %v498 = vunpack.c.l.b16 %v234
        %v499 = vunpack.c.l.b16 %v235
        %v500 = vunpack.c.l.b16 %v236
        %v501 = vunpack.c.l.b16 %v237
        %v502 = vunpack.c.l.b16 %v238
        %v503 = vunpack.c.l.b16 %v239
        %v504 = vunpack.c.l.b16 %v240
        %v505 = vunpack.c.l.b16 %v241
        %v506 = vunpack.c.l.b16 %v242
        %v507 = vpack.c.b16 %v476, %v475
        %v508 = vpack.c.b16 %v478, %v477
        %v509 = vpack.c.b16 %v480, %v479
        %v510 = vpack.c.b16 %v482, %v481
        %v511 = vpack.c.b16 %v484, %v483
        %v512 = vpack.c.b16 %v486, %v485
        %v513 = vpack.c.b16 %v488, %v487
        %v514 = vpack.c.b16 %v490, %v489
        %v515 = vpack.c.b16 %v492, %v491
        %v516 = vpack.c.b16 %v494, %v493
        %v517 = vpack.c.b16 %v496, %v495
        %v518 = vpack.c.b16 %v498, %v497
        %v519 = vpack.c.b16 %v500, %v499
        %v520 = vpack.c.b16 %v502, %v501
        %v521 = vpack.c.b16 %v504, %v503
        %v522 = vpack.c.b16 %v506, %v505
        %539 = vmatprep.subr.bf16.mxu0 0
        %540 = vmatpush1.bf16.msra.mxu0 %v250
        %541 = vmatprep.subr.bf16.mxu0 0
        %542 = vmatpush1.bf16.msra.mxu0 %v249
        %543 = vmatprep.subr.bf16.mxu0 0
        %544 = vmatpush1.bf16.msra.mxu0 %v248
        %545 = vmatprep.subr.bf16.mxu0 0
        %546 = vmatpush1.bf16.msra.mxu0 %v247
        %547 = vmatprep.subr.bf16.mxu0 0
        %548 = vmatpush1.bf16.msra.mxu0 %v246
        %549 = vmatprep.subr.bf16.mxu0 0
        %550 = vmatpush1.bf16.msra.mxu0 %v245
        %551 = vmatprep.subr.bf16.mxu0 0
        %552 = vmatpush1.bf16.msra.mxu0 %v244
        %553 = vmatprep.subr.bf16.mxu0 0
        %554 = vmatpush1.bf16.msra.mxu0 %v243
        %555 = vmatprep.subr.bf16.mxu0 0
        %556 = vmatpush2.bf16.msra.mxu0 0
        %557 = vmatprep.subr.bf16.mxu0 0
        %558 = vmatpush2.bf16.msra.mxu0 0
        %559 = vmatprep.subr.bf16.mxu0 0
        %560 = vmatpush2.bf16.msra.mxu0 0
        %561 = vmatprep.subr.bf16.mxu0 0
        %562 = vmatpush2.bf16.msra.mxu0 0
        %563 = vmatprep.subr.bf16.mxu0 0
        %564 = vmatpush2.bf16.msra.mxu0 0
        %565 = vmatprep.subr.bf16.mxu0 0
        %566 = vmatpush2.bf16.msra.mxu0 0
        %567 = vmatprep.subr.bf16.mxu0 0
        %568 = vmatpush2.bf16.msra.mxu0 0
        %569 = vmatprep.subr.bf16.mxu0 0
        %570 = vmatpush2.bf16.msra.mxu0 0
        %571 = vmatprep.mubr.bf16.mxu0 0
        %572 = vmatmul.mubr.bf16.gmra.mxu0 %v507
        %v573 = vpop.f32.mrf.mxu0
        %v574 = vadd.f32 %v286, %v573
        %v575 = vpop.f32.mrf.mxu0
        %v576 = vpop.f32.mrf.mxu0
        %v577 = vadd.f32 %v291, %v576
        %v578 = vpop.f32.mrf.mxu0
        %579 = vmatprep.mubr.bf16.mxu0 0
        %580 = vmatmul.mubr.bf16.gmra.mxu0 %v508
        %v581 = vpop.f32.mrf.mxu0
        %v582 = vadd.f32 %v296, %v581
        %v583 = vpop.f32.mrf.mxu0
        %v584 = vpop.f32.mrf.mxu0
        %v585 = vadd.f32 %v301, %v584
        %v586 = vpop.f32.mrf.mxu0
        %587 = vmatprep.mubr.bf16.mxu0 0
        %588 = vmatmul.mubr.bf16.gmra.mxu0 %v509
        %v589 = vpop.f32.mrf.mxu0
        %v590 = vadd.f32 %v306, %v589
        %v591 = vpop.f32.mrf.mxu0
        %v592 = vpop.f32.mrf.mxu0
        %v593 = vadd.f32 %v311, %v592
        %v594 = vpop.f32.mrf.mxu0
        %595 = vmatprep.mubr.bf16.mxu0 0
        %596 = vmatmul.mubr.bf16.gmra.mxu0 %v510
        %v597 = vpop.f32.mrf.mxu0
        %v598 = vadd.f32 %v316, %v597
        %v599 = vpop.f32.mrf.mxu0
        %v600 = vpop.f32.mrf.mxu0
        %v601 = vadd.f32 %v321, %v600
        %v602 = vpop.f32.mrf.mxu0
        %603 = vmatprep.mubr.bf16.mxu0 0
        %604 = vmatmul.mubr.bf16.gmra.mxu0 %v511
        %v605 = vpop.f32.mrf.mxu0
        %v606 = vadd.f32 %v326, %v605
        %v607 = vpop.f32.mrf.mxu0
        %v608 = vpop.f32.mrf.mxu0
        %v609 = vadd.f32 %v331, %v608
        %v610 = vpop.f32.mrf.mxu0
        %611 = vmatprep.mubr.bf16.mxu0 0
        %612 = vmatmul.mubr.bf16.gmra.mxu0 %v512
        %v613 = vpop.f32.mrf.mxu0
        %v614 = vadd.f32 %v336, %v613
        %v615 = vpop.f32.mrf.mxu0
        %v616 = vpop.f32.mrf.mxu0
        %v617 = vadd.f32 %v341, %v616
        %v618 = vpop.f32.mrf.mxu0
        %619 = vmatprep.mubr.bf16.mxu0 0
        %620 = vmatmul.mubr.bf16.gmra.mxu0 %v513
        %v621 = vpop.f32.mrf.mxu0
        %v622 = vadd.f32 %v346, %v621
        %v623 = vpop.f32.mrf.mxu0
        %v624 = vpop.f32.mrf.mxu0
        %v625 = vadd.f32 %v351, %v624
        %v626 = vpop.f32.mrf.mxu0
        %627 = vmatprep.mubr.bf16.mxu0 0
        %628 = vmatmul.mubr.bf16.gmra.mxu0 %v514
        %v629 = vpop.f32.mrf.mxu0
        %v630 = vadd.f32 %v356, %v629
        %v631 = vpop.f32.mrf.mxu0
        %v632 = vpop.f32.mrf.mxu0
        %v633 = vadd.f32 %v361, %v632
        %v634 = vpop.f32.mrf.mxu0
        %635 = vmatprep.mubr.bf16.mxu0 0
        %636 = vmatmul.mubr.bf16.gmra.mxu0 %v515
        %v637 = vpop.f32.mrf.mxu0
        %v638 = vadd.f32 %v366, %v637
        %v639 = vpop.f32.mrf.mxu0
        %v640 = vpop.f32.mrf.mxu0
        %v641 = vadd.f32 %v371, %v640
        %v642 = vpop.f32.mrf.mxu0
        %643 = vmatprep.mubr.bf16.mxu0 0
        %644 = vmatmul.mubr.bf16.gmra.mxu0 %v516
        %v645 = vpop.f32.mrf.mxu0
        %v646 = vadd.f32 %v376, %v645
        %v647 = vpop.f32.mrf.mxu0
        %v648 = vpop.f32.mrf.mxu0
        %v649 = vadd.f32 %v381, %v648
        %v650 = vpop.f32.mrf.mxu0
        %651 = vmatprep.mubr.bf16.mxu0 0
        %652 = vmatmul.mubr.bf16.gmra.mxu0 %v517
        %v653 = vpop.f32.mrf.mxu0
        %v654 = vadd.f32 %v386, %v653
        %v655 = vpop.f32.mrf.mxu0
        %v656 = vpop.f32.mrf.mxu0
        %v657 = vadd.f32 %v391, %v656
        %v658 = vpop.f32.mrf.mxu0
        %659 = vmatprep.mubr.bf16.mxu0 0
        %660 = vmatmul.mubr.bf16.gmra.mxu0 %v518
        %v661 = vpop.f32.mrf.mxu0
        %v662 = vadd.f32 %v396, %v661
        %v663 = vpop.f32.mrf.mxu0
        %v664 = vpop.f32.mrf.mxu0
        %v665 = vadd.f32 %v401, %v664
        %v666 = vpop.f32.mrf.mxu0
        %667 = vmatprep.mubr.bf16.mxu0 0
        %668 = vmatmul.mubr.bf16.gmra.mxu0 %v519
        %v669 = vpop.f32.mrf.mxu0
        %v670 = vadd.f32 %v406, %v669
        %v671 = vpop.f32.mrf.mxu0
        %v672 = vpop.f32.mrf.mxu0
        %v673 = vadd.f32 %v411, %v672
        %v674 = vpop.f32.mrf.mxu0
        %675 = vmatprep.mubr.bf16.mxu0 0
        %676 = vmatmul.mubr.bf16.gmra.mxu0 %v520
        %v677 = vpop.f32.mrf.mxu0
        %v678 = vadd.f32 %v416, %v677
        %v679 = vpop.f32.mrf.mxu0
        %v680 = vpop.f32.mrf.mxu0
        %v681 = vadd.f32 %v421, %v680
        %v682 = vpop.f32.mrf.mxu0
        %683 = vmatprep.mubr.bf16.mxu0 0
        %684 = vmatmul.mubr.bf16.gmra.mxu0 %v521
        %v685 = vpop.f32.mrf.mxu0
        %v686 = vadd.f32 %v426, %v685
        %v687 = vpop.f32.mrf.mxu0
        %v688 = vpop.f32.mrf.mxu0
        %v689 = vadd.f32 %v431, %v688
        %v690 = vpop.f32.mrf.mxu0
        %691 = vmatprep.mubr.bf16.mxu0 0
        %692 = vmatmul.mubr.bf16.gmra.mxu0 %v522
        %v693 = vpop.f32.mrf.mxu0
        %v694 = vadd.f32 %v436, %v693
        %v695 = vpop.f32.mrf.mxu0
        %v696 = vpop.f32.mrf.mxu0
        %v697 = vadd.f32 %v441, %v696
        %v698 = vpop.f32.mrf.mxu0
        %699 = vdwg.mxu0
        %v700 = vxor.u32 %v574, 2147483648
        %v701 = vxor.u32 %v577, 2147483648
        %v702 = vxor.u32 %v582, 2147483648
        %v703 = vxor.u32 %v585, 2147483648
        %v704 = vxor.u32 %v590, 2147483648
        %v705 = vxor.u32 %v593, 2147483648
        %v706 = vxor.u32 %v598, 2147483648
        %v707 = vxor.u32 %v601, 2147483648
        %v708 = vxor.u32 %v606, 2147483648
        %v709 = vxor.u32 %v609, 2147483648
        %v710 = vxor.u32 %v614, 2147483648
        %v711 = vxor.u32 %v617, 2147483648
        %v712 = vxor.u32 %v622, 2147483648
        %v713 = vxor.u32 %v625, 2147483648
        %v714 = vxor.u32 %v630, 2147483648
        %v715 = vxor.u32 %v633, 2147483648
        %v716 = vmul.f32 %v700, 1.442695
        %v717 = vpow.pop %v716
        %v718 = vmul.f32 %v701, 1.442695
        %v719 = vpow.pop %v718
        %v720 = vmul.f32 %v702, 1.442695
        %v721 = vpow.pop %v720
        %v722 = vmul.f32 %v703, 1.442695
        %v723 = vpow.pop %v722
        %v724 = vmul.f32 %v704, 1.442695
        %v725 = vpow.pop %v724
        %v726 = vmul.f32 %v705, 1.442695
        %v727 = vpow.pop %v726
        %v728 = vmul.f32 %v706, 1.442695
        %v729 = vpow.pop %v728
        %v730 = vmul.f32 %v707, 1.442695
        %v731 = vpow.pop %v730
        %v732 = vmul.f32 %v708, 1.442695
        %v733 = vpow.pop %v732
        %v734 = vmul.f32 %v709, 1.442695
        %v735 = vpow.pop %v734
        %v736 = vmul.f32 %v710, 1.442695
        %v737 = vpow.pop %v736
        %v738 = vmul.f32 %v711, 1.442695
        %v739 = vpow.pop %v738
        %v740 = vmul.f32 %v712, 1.442695
        %v741 = vpow.pop %v740
        %v742 = vmul.f32 %v713, 1.442695
        %v743 = vpow.pop %v742
        %v744 = vmul.f32 %v714, 1.442695
        %v745 = vpow.pop %v744
        %v746 = vmul.f32 %v715, 1.442695
        %v747 = vpow.pop %v746
        %v748 = vadd.f32 %v717, 1.0
        %v749 = vadd.f32 %v719, 1.0
        %v750 = vadd.f32 %v721, 1.0
        %v751 = vadd.f32 %v723, 1.0
        %v752 = vadd.f32 %v725, 1.0
        %v753 = vadd.f32 %v727, 1.0
        %v754 = vadd.f32 %v729, 1.0
        %v755 = vadd.f32 %v731, 1.0
        %v756 = vadd.f32 %v733, 1.0
        %v757 = vadd.f32 %v735, 1.0
        %v758 = vadd.f32 %v737, 1.0
        %v759 = vadd.f32 %v739, 1.0
        %v760 = vadd.f32 %v741, 1.0
        %v761 = vadd.f32 %v743, 1.0
        %v762 = vadd.f32 %v745, 1.0
        %v763 = vadd.f32 %v747, 1.0
        %v764 = vrcp.pop %v748
        %v765 = vmul.f32 1.0, %v764
        %v766 = vrcp.pop %v749
        %v767 = vmul.f32 1.0, %v766
        %v768 = vrcp.pop %v750
        %v769 = vmul.f32 1.0, %v768
        %v770 = vrcp.pop %v751
        %v771 = vmul.f32 1.0, %v770
        %v772 = vrcp.pop %v752
        %v773 = vmul.f32 1.0, %v772
        %v774 = vrcp.pop %v753
        %v775 = vmul.f32 1.0, %v774
        %v776 = vrcp.pop %v754
        %v777 = vmul.f32 1.0, %v776
        %v778 = vrcp.pop %v755
        %v779 = vmul.f32 1.0, %v778
        %v780 = vrcp.pop %v756
        %v781 = vmul.f32 1.0, %v780
        %v782 = vrcp.pop %v757
        %v783 = vmul.f32 1.0, %v782
        %v784 = vrcp.pop %v758
        %v785 = vmul.f32 1.0, %v784
        %v786 = vrcp.pop %v759
        %v787 = vmul.f32 1.0, %v786
        %v788 = vrcp.pop %v760
        %v789 = vmul.f32 1.0, %v788
        %v790 = vrcp.pop %v761
        %v791 = vmul.f32 1.0, %v790
        %v792 = vrcp.pop %v762
        %v793 = vmul.f32 1.0, %v792
        %v794 = vrcp.pop %v763
        %v795 = vmul.f32 1.0, %v794
        %v796 = vsub.f32 %v638, %v195
        %v797 = vsub.f32 %v641, %v196
        %v798 = vsub.f32 %v646, %v197
        %v799 = vsub.f32 %v649, %v198
        %v800 = vsub.f32 %v654, %v199
        %v801 = vsub.f32 %v657, %v200
        %v802 = vsub.f32 %v662, %v201
        %v803 = vsub.f32 %v665, %v202
        %v804 = vsub.f32 %v670, %v203
        %v805 = vsub.f32 %v673, %v204
        %v806 = vsub.f32 %v678, %v205
        %v807 = vsub.f32 %v681, %v206
        %v808 = vsub.f32 %v686, %v207
        %v809 = vsub.f32 %v689, %v208
        %v810 = vsub.f32 %v694, %v209
        %v811 = vsub.f32 %v697, %v210
        %v812 = vmul.f32 %v765, %v796
        %v813 = vmul.f32 %v767, %v797
        %v814 = vmul.f32 %v769, %v798
        %v815 = vmul.f32 %v771, %v799
        %v816 = vmul.f32 %v773, %v800
        %v817 = vmul.f32 %v775, %v801
        %v818 = vmul.f32 %v777, %v802
        %v819 = vmul.f32 %v779, %v803
        %v820 = vmul.f32 %v781, %v804
        %v821 = vmul.f32 %v783, %v805
        %v822 = vmul.f32 %v785, %v806
        %v823 = vmul.f32 %v787, %v807
        %v824 = vmul.f32 %v789, %v808
        %v825 = vmul.f32 %v791, %v809
        %v826 = vmul.f32 %v793, %v810
        %v827 = vmul.f32 %v795, %v811
        %v828 = vadd.f32 %v812, %v195
        %v829 = vadd.f32 %v813, %v196
        %v830 = vadd.f32 %v814, %v197
        %v831 = vadd.f32 %v815, %v198
        %v832 = vadd.f32 %v816, %v199
        %v833 = vadd.f32 %v817, %v200
        %v834 = vadd.f32 %v818, %v201
        %v835 = vadd.f32 %v819, %v202
        %v836 = vadd.f32 %v820, %v203
        %v837 = vadd.f32 %v821, %v204
        %v838 = vadd.f32 %v822, %v205
        %v839 = vadd.f32 %v823, %v206
        %v840 = vadd.f32 %v824, %v207
        %v841 = vadd.f32 %v825, %v208
        %v842 = vadd.f32 %v826, %v209
        %v843 = vadd.f32 %v827, %v210
        %s844 = scalar_lea.vmem %s1, 128
        %v845 = vld [vmem:[%s844] sm:$0xf]
        %v846 = vld [vmem:[%s844 + $0x4] sm:$0xf]
        %v847 = vld [vmem:[%s844 + $0x8] sm:$0xf]
        %v848 = vld [vmem:[%s844 + $0xc] sm:$0xf]
        %v849 = vld [vmem:[%s844 + $0x10] sm:$0xf]
        %v850 = vld [vmem:[%s844 + $0x14] sm:$0xf]
        %v851 = vld [vmem:[%s844 + $0x18] sm:$0xf]
        %v852 = vld [vmem:[%s844 + $0x1c] sm:$0xf]
        %v853 = vld [vmem:[%s844 + $0x20] sm:$0xf]
        %v854 = vld [vmem:[%s844 + $0x24] sm:$0xf]
        %v855 = vld [vmem:[%s844 + $0x28] sm:$0xf]
        %v856 = vld [vmem:[%s844 + $0x2c] sm:$0xf]
        %v857 = vld [vmem:[%s844 + $0x30] sm:$0xf]
        %v858 = vld [vmem:[%s844 + $0x34] sm:$0xf]
        %v859 = vld [vmem:[%s844 + $0x38] sm:$0xf]
        %v860 = vld [vmem:[%s844 + $0x3c] sm:$0xf]
        %v861 = vld [vmem:[%s844 + $0x40] sm:$0xf]
        %v862 = vld [vmem:[%s844 + $0x44] sm:$0xf]
        %v863 = vld [vmem:[%s844 + $0x48] sm:$0xf]
        %v864 = vld [vmem:[%s844 + $0x4c] sm:$0xf]
        %v865 = vld [vmem:[%s844 + $0x50] sm:$0xf]
        %v866 = vld [vmem:[%s844 + $0x54] sm:$0xf]
        %v867 = vld [vmem:[%s844 + $0x58] sm:$0xf]
        %v868 = vld [vmem:[%s844 + $0x5c] sm:$0xf]
        %v869 = vld [vmem:[%s844 + $0x60] sm:$0xf]
        %v870 = vld [vmem:[%s844 + $0x64] sm:$0xf]
        %v871 = vld [vmem:[%s844 + $0x68] sm:$0xf]
        %v872 = vld [vmem:[%s844 + $0x6c] sm:$0xf]
        %v873 = vld [vmem:[%s844 + $0x70] sm:$0xf]
        %v874 = vld [vmem:[%s844 + $0x74] sm:$0xf]
        %v875 = vld [vmem:[%s844 + $0x78] sm:$0xf]
        %v876 = vld [vmem:[%s844 + $0x7c] sm:$0xf]
        %v877 = vpack.c.bf16 %v829, %v828
        %v878 = vpack.c.bf16 %v831, %v830
        %v879 = vpack.c.bf16 %v833, %v832
        %v880 = vpack.c.bf16 %v835, %v834
        %v881 = vpack.c.bf16 %v837, %v836
        %v882 = vpack.c.bf16 %v839, %v838
        %v883 = vpack.c.bf16 %v841, %v840
        %v884 = vpack.c.bf16 %v843, %v842
        %s885 = scalar_lea.vmem %s2, 256
        %v886 = vld [vmem:[%s885] sm:$0xff]
        %v887 = vld [vmem:[%s885 + $0x8] sm:$0xff]
        %v888 = vld [vmem:[%s885 + $0x10] sm:$0xff]
        %v889 = vld [vmem:[%s885 + $0x18] sm:$0xff]
        %v890 = vld [vmem:[%s885 + $0x20] sm:$0xff]
        %v891 = vld [vmem:[%s885 + $0x28] sm:$0xff]
        %v892 = vld [vmem:[%s885 + $0x30] sm:$0xff]
        %v893 = vld [vmem:[%s885 + $0x38] sm:$0xff]
        %v894 = vld [vmem:[%s885 + $0x40] sm:$0xff]
        %v895 = vld [vmem:[%s885 + $0x48] sm:$0xff]
        %v896 = vld [vmem:[%s885 + $0x50] sm:$0xff]
        %v897 = vld [vmem:[%s885 + $0x58] sm:$0xff]
        %v898 = vld [vmem:[%s885 + $0x60] sm:$0xff]
        %v899 = vld [vmem:[%s885 + $0x68] sm:$0xff]
        %v900 = vld [vmem:[%s885 + $0x70] sm:$0xff]
        %v901 = vld [vmem:[%s885 + $0x78] sm:$0xff]
        %v902 = vld [vmem:[%s885 + $0x80] sm:$0xff]
        %v903 = vld [vmem:[%s885 + $0x88] sm:$0xff]
        %v904 = vld [vmem:[%s885 + $0x90] sm:$0xff]
        %v905 = vld [vmem:[%s885 + $0x98] sm:$0xff]
        %v906 = vld [vmem:[%s885 + $0xa0] sm:$0xff]
        %v907 = vld [vmem:[%s885 + $0xa8] sm:$0xff]
        %v908 = vld [vmem:[%s885 + $0xb0] sm:$0xff]
        %v909 = vld [vmem:[%s885 + $0xb8] sm:$0xff]
        %v910 = vld [vmem:[%s885 + $0xc0] sm:$0xff]
        %v911 = vld [vmem:[%s885 + $0xc8] sm:$0xff]
        %v912 = vld [vmem:[%s885 + $0xd0] sm:$0xff]
        %v913 = vld [vmem:[%s885 + $0xd8] sm:$0xff]
        %v914 = vld [vmem:[%s885 + $0xe0] sm:$0xff]
        %v915 = vld [vmem:[%s885 + $0xe8] sm:$0xff]
        %v916 = vld [vmem:[%s885 + $0xf0] sm:$0xff]
        %v917 = vld [vmem:[%s885 + $0xf8] sm:$0xff]
        %919 = vset.pattern.permute.xlu0 0
        %920 = vperm.xlu0 %919, %v886
        %v921 = vpop.permute.xlu0 %920
        %924 = vset.pattern.permute.xlu0 0
        %925 = vperm.xlu0 %924, %v887
        %v926 = vpop.permute.xlu0 %925
        %929 = vset.pattern.permute.xlu0 0
        %930 = vperm.xlu0 %929, %v888
        %v931 = vpop.permute.xlu0 %930
        %934 = vset.pattern.permute.xlu0 0
        %935 = vperm.xlu0 %934, %v889
        %v936 = vpop.permute.xlu0 %935
        %939 = vset.pattern.permute.xlu0 0
        %940 = vperm.xlu0 %939, %v890
        %v941 = vpop.permute.xlu0 %940
        %944 = vset.pattern.permute.xlu0 0
        %945 = vperm.xlu0 %944, %v891
        %v946 = vpop.permute.xlu0 %945
        %949 = vset.pattern.permute.xlu0 0
        %950 = vperm.xlu0 %949, %v892
        %v951 = vpop.permute.xlu0 %950
        %954 = vset.pattern.permute.xlu0 0
        %955 = vperm.xlu0 %954, %v893
        %v956 = vpop.permute.xlu0 %955
        %959 = vset.pattern.permute.xlu0 0
        %960 = vperm.xlu0 %959, %v894
        %v961 = vpop.permute.xlu0 %960
        %964 = vset.pattern.permute.xlu0 0
        %965 = vperm.xlu0 %964, %v895
        %v966 = vpop.permute.xlu0 %965
        %969 = vset.pattern.permute.xlu0 0
        %970 = vperm.xlu0 %969, %v896
        %v971 = vpop.permute.xlu0 %970
        %974 = vset.pattern.permute.xlu0 0
        %975 = vperm.xlu0 %974, %v897
        %v976 = vpop.permute.xlu0 %975
        %979 = vset.pattern.permute.xlu0 0
        %980 = vperm.xlu0 %979, %v898
        %v981 = vpop.permute.xlu0 %980
        %984 = vset.pattern.permute.xlu0 0
        %985 = vperm.xlu0 %984, %v899
        %v986 = vpop.permute.xlu0 %985
        %989 = vset.pattern.permute.xlu0 0
        %990 = vperm.xlu0 %989, %v900
        %v991 = vpop.permute.xlu0 %990
        %994 = vset.pattern.permute.xlu0 0
        %995 = vperm.xlu0 %994, %v901
        %v996 = vpop.permute.xlu0 %995
        %999 = vset.pattern.permute.xlu0 0
        %1000 = vperm.xlu0 %999, %v902
        %v1001 = vpop.permute.xlu0 %1000
        %1004 = vset.pattern.permute.xlu0 0
        %1005 = vperm.xlu0 %1004, %v903
        %v1006 = vpop.permute.xlu0 %1005
        %1009 = vset.pattern.permute.xlu0 0
        %1010 = vperm.xlu0 %1009, %v904
        %v1011 = vpop.permute.xlu0 %1010
        %1014 = vset.pattern.permute.xlu0 0
        %1015 = vperm.xlu0 %1014, %v905
        %v1016 = vpop.permute.xlu0 %1015
        %1019 = vset.pattern.permute.xlu0 0
        %1020 = vperm.xlu0 %1019, %v906
        %v1021 = vpop.permute.xlu0 %1020
        %1024 = vset.pattern.permute.xlu0 0
        %1025 = vperm.xlu0 %1024, %v907
        %v1026 = vpop.permute.xlu0 %1025
        %1029 = vset.pattern.permute.xlu0 0
        %1030 = vperm.xlu0 %1029, %v908
        %v1031 = vpop.permute.xlu0 %1030
        %1034 = vset.pattern.permute.xlu0 0
        %1035 = vperm.xlu0 %1034, %v909
        %v1036 = vpop.permute.xlu0 %1035
        %1039 = vset.pattern.permute.xlu0 0
        %1040 = vperm.xlu0 %1039, %v910
        %v1041 = vpop.permute.xlu0 %1040
        %1044 = vset.pattern.permute.xlu0 0
        %1045 = vperm.xlu0 %1044, %v911
        %v1046 = vpop.permute.xlu0 %1045
        %1049 = vset.pattern.permute.xlu0 0
        %1050 = vperm.xlu0 %1049, %v912
        %v1051 = vpop.permute.xlu0 %1050
        %1054 = vset.pattern.permute.xlu0 0
        %1055 = vperm.xlu0 %1054, %v913
        %v1056 = vpop.permute.xlu0 %1055
        %1059 = vset.pattern.permute.xlu0 0
        %1060 = vperm.xlu0 %1059, %v914
        %v1061 = vpop.permute.xlu0 %1060
        %1064 = vset.pattern.permute.xlu0 0
        %1065 = vperm.xlu0 %1064, %v915
        %v1066 = vpop.permute.xlu0 %1065
        %1069 = vset.pattern.permute.xlu0 0
        %1070 = vperm.xlu0 %1069, %v916
        %v1071 = vpop.permute.xlu0 %1070
        %1074 = vset.pattern.permute.xlu0 0
        %1075 = vperm.xlu0 %1074, %v917
        %v1076 = vpop.permute.xlu0 %1075
        %v1110 = vunpack.c.l.b16 %v845
        %v1111 = vunpack.c.l.b16 %v846
        %v1112 = vunpack.c.l.b16 %v847
        %v1113 = vunpack.c.l.b16 %v848
        %v1114 = vunpack.c.l.b16 %v849
        %v1115 = vunpack.c.l.b16 %v850
        %v1116 = vunpack.c.l.b16 %v851
        %v1117 = vunpack.c.l.b16 %v852
        %v1118 = vunpack.c.l.b16 %v853
        %v1119 = vunpack.c.l.b16 %v854
        %v1120 = vunpack.c.l.b16 %v855
        %v1121 = vunpack.c.l.b16 %v856
        %v1122 = vunpack.c.l.b16 %v857
        %v1123 = vunpack.c.l.b16 %v858
        %v1124 = vunpack.c.l.b16 %v859
        %v1125 = vunpack.c.l.b16 %v860
        %v1126 = vunpack.c.l.b16 %v861
        %v1127 = vunpack.c.l.b16 %v862
        %v1128 = vunpack.c.l.b16 %v863
        %v1129 = vunpack.c.l.b16 %v864
        %v1130 = vunpack.c.l.b16 %v865
        %v1131 = vunpack.c.l.b16 %v866
        %v1132 = vunpack.c.l.b16 %v867
        %v1133 = vunpack.c.l.b16 %v868
        %v1134 = vunpack.c.l.b16 %v869
        %v1135 = vunpack.c.l.b16 %v870
        %v1136 = vunpack.c.l.b16 %v871
        %v1137 = vunpack.c.l.b16 %v872
        %v1138 = vunpack.c.l.b16 %v873
        %v1139 = vunpack.c.l.b16 %v874
        %v1140 = vunpack.c.l.b16 %v875
        %v1141 = vunpack.c.l.b16 %v876
        %v1142 = vpack.c.b16 %v1111, %v1110
        %v1143 = vpack.c.b16 %v1113, %v1112
        %v1144 = vpack.c.b16 %v1115, %v1114
        %v1145 = vpack.c.b16 %v1117, %v1116
        %v1146 = vpack.c.b16 %v1119, %v1118
        %v1147 = vpack.c.b16 %v1121, %v1120
        %v1148 = vpack.c.b16 %v1123, %v1122
        %v1149 = vpack.c.b16 %v1125, %v1124
        %v1150 = vpack.c.b16 %v1127, %v1126
        %v1151 = vpack.c.b16 %v1129, %v1128
        %v1152 = vpack.c.b16 %v1131, %v1130
        %v1153 = vpack.c.b16 %v1133, %v1132
        %v1154 = vpack.c.b16 %v1135, %v1134
        %v1155 = vpack.c.b16 %v1137, %v1136
        %v1156 = vpack.c.b16 %v1139, %v1138
        %v1157 = vpack.c.b16 %v1141, %v1140
        %1174 = vmatprep.subr.bf16.mxu0 0
        %1175 = vmatpush1.bf16.msra.mxu0 %v884
        %1176 = vmatprep.subr.bf16.mxu0 0
        %1177 = vmatpush1.bf16.msra.mxu0 %v883
        %1178 = vmatprep.subr.bf16.mxu0 0
        %1179 = vmatpush1.bf16.msra.mxu0 %v882
        %1180 = vmatprep.subr.bf16.mxu0 0
        %1181 = vmatpush1.bf16.msra.mxu0 %v881
        %1182 = vmatprep.subr.bf16.mxu0 0
        %1183 = vmatpush1.bf16.msra.mxu0 %v880
        %1184 = vmatprep.subr.bf16.mxu0 0
        %1185 = vmatpush1.bf16.msra.mxu0 %v879
        %1186 = vmatprep.subr.bf16.mxu0 0
        %1187 = vmatpush1.bf16.msra.mxu0 %v878
        %1188 = vmatprep.subr.bf16.mxu0 0
        %1189 = vmatpush1.bf16.msra.mxu0 %v877
        %1190 = vmatprep.subr.bf16.mxu0 0
        %1191 = vmatpush2.bf16.msra.mxu0 0
        %1192 = vmatprep.subr.bf16.mxu0 0
        %1193 = vmatpush2.bf16.msra.mxu0 0
        %1194 = vmatprep.subr.bf16.mxu0 0
        %1195 = vmatpush2.bf16.msra.mxu0 0
        %1196 = vmatprep.subr.bf16.mxu0 0
        %1197 = vmatpush2.bf16.msra.mxu0 0
        %1198 = vmatprep.subr.bf16.mxu0 0
        %1199 = vmatpush2.bf16.msra.mxu0 0
        %1200 = vmatprep.subr.bf16.mxu0 0
        %1201 = vmatpush2.bf16.msra.mxu0 0
        %1202 = vmatprep.subr.bf16.mxu0 0
        %1203 = vmatpush2.bf16.msra.mxu0 0
        %1204 = vmatprep.subr.bf16.mxu0 0
        %1205 = vmatpush2.bf16.msra.mxu0 0
        %1206 = vmatprep.mubr.bf16.mxu0 0
        %1207 = vmatmul.mubr.bf16.gmra.mxu0 %v1142
        %v1208 = vpop.f32.mrf.mxu0
        %v1209 = vadd.f32 %v921, %v1208
        %v1210 = vpop.f32.mrf.mxu0
        %v1211 = vpop.f32.mrf.mxu0
        %v1212 = vadd.f32 %v926, %v1211
        %v1213 = vpop.f32.mrf.mxu0
        %1214 = vmatprep.mubr.bf16.mxu0 0
        %1215 = vmatmul.mubr.bf16.gmra.mxu0 %v1143
        %v1216 = vpop.f32.mrf.mxu0
        %v1217 = vadd.f32 %v931, %v1216
        %v1218 = vpop.f32.mrf.mxu0
        %v1219 = vpop.f32.mrf.mxu0
        %v1220 = vadd.f32 %v936, %v1219
        %v1221 = vpop.f32.mrf.mxu0
        %1222 = vmatprep.mubr.bf16.mxu0 0
        %1223 = vmatmul.mubr.bf16.gmra.mxu0 %v1144
        %v1224 = vpop.f32.mrf.mxu0
        %v1225 = vadd.f32 %v941, %v1224
        %v1226 = vpop.f32.mrf.mxu0
        %v1227 = vpop.f32.mrf.mxu0
        %v1228 = vadd.f32 %v946, %v1227
        %v1229 = vpop.f32.mrf.mxu0
        %1230 = vmatprep.mubr.bf16.mxu0 0
        %1231 = vmatmul.mubr.bf16.gmra.mxu0 %v1145
        %v1232 = vpop.f32.mrf.mxu0
        %v1233 = vadd.f32 %v951, %v1232
        %v1234 = vpop.f32.mrf.mxu0
        %v1235 = vpop.f32.mrf.mxu0
        %v1236 = vadd.f32 %v956, %v1235
        %v1237 = vpop.f32.mrf.mxu0
        %1238 = vmatprep.mubr.bf16.mxu0 0
        %1239 = vmatmul.mubr.bf16.gmra.mxu0 %v1146
        %v1240 = vpop.f32.mrf.mxu0
        %v1241 = vadd.f32 %v961, %v1240
        %v1242 = vpop.f32.mrf.mxu0
        %v1243 = vpop.f32.mrf.mxu0
        %v1244 = vadd.f32 %v966, %v1243
        %v1245 = vpop.f32.mrf.mxu0
        %1246 = vmatprep.mubr.bf16.mxu0 0
        %1247 = vmatmul.mubr.bf16.gmra.mxu0 %v1147
        %v1248 = vpop.f32.mrf.mxu0
        %v1249 = vadd.f32 %v971, %v1248
        %v1250 = vpop.f32.mrf.mxu0
        %v1251 = vpop.f32.mrf.mxu0
        %v1252 = vadd.f32 %v976, %v1251
        %v1253 = vpop.f32.mrf.mxu0
        %1254 = vmatprep.mubr.bf16.mxu0 0
        %1255 = vmatmul.mubr.bf16.gmra.mxu0 %v1148
        %v1256 = vpop.f32.mrf.mxu0
        %v1257 = vadd.f32 %v981, %v1256
        %v1258 = vpop.f32.mrf.mxu0
        %v1259 = vpop.f32.mrf.mxu0
        %v1260 = vadd.f32 %v986, %v1259
        %v1261 = vpop.f32.mrf.mxu0
        %1262 = vmatprep.mubr.bf16.mxu0 0
        %1263 = vmatmul.mubr.bf16.gmra.mxu0 %v1149
        %v1264 = vpop.f32.mrf.mxu0
        %v1265 = vadd.f32 %v991, %v1264
        %v1266 = vpop.f32.mrf.mxu0
        %v1267 = vpop.f32.mrf.mxu0
        %v1268 = vadd.f32 %v996, %v1267
        %v1269 = vpop.f32.mrf.mxu0
        %1270 = vmatprep.mubr.bf16.mxu0 0
        %1271 = vmatmul.mubr.bf16.gmra.mxu0 %v1150
        %v1272 = vpop.f32.mrf.mxu0
        %v1273 = vadd.f32 %v1001, %v1272
        %v1274 = vpop.f32.mrf.mxu0
        %v1275 = vpop.f32.mrf.mxu0
        %v1276 = vadd.f32 %v1006, %v1275
        %v1277 = vpop.f32.mrf.mxu0
        %1278 = vmatprep.mubr.bf16.mxu0 0
        %1279 = vmatmul.mubr.bf16.gmra.mxu0 %v1151
        %v1280 = vpop.f32.mrf.mxu0
        %v1281 = vadd.f32 %v1011, %v1280
        %v1282 = vpop.f32.mrf.mxu0
        %v1283 = vpop.f32.mrf.mxu0
        %v1284 = vadd.f32 %v1016, %v1283
        %v1285 = vpop.f32.mrf.mxu0
        %1286 = vmatprep.mubr.bf16.mxu0 0
        %1287 = vmatmul.mubr.bf16.gmra.mxu0 %v1152
        %v1288 = vpop.f32.mrf.mxu0
        %v1289 = vadd.f32 %v1021, %v1288
        %v1290 = vpop.f32.mrf.mxu0
        %v1291 = vpop.f32.mrf.mxu0
        %v1292 = vadd.f32 %v1026, %v1291
        %v1293 = vpop.f32.mrf.mxu0
        %1294 = vmatprep.mubr.bf16.mxu0 0
        %1295 = vmatmul.mubr.bf16.gmra.mxu0 %v1153
        %v1296 = vpop.f32.mrf.mxu0
        %v1297 = vadd.f32 %v1031, %v1296
        %v1298 = vpop.f32.mrf.mxu0
        %v1299 = vpop.f32.mrf.mxu0
        %v1300 = vadd.f32 %v1036, %v1299
        %v1301 = vpop.f32.mrf.mxu0
        %1302 = vmatprep.mubr.bf16.mxu0 0
        %1303 = vmatmul.mubr.bf16.gmra.mxu0 %v1154
        %v1304 = vpop.f32.mrf.mxu0
        %v1305 = vadd.f32 %v1041, %v1304
        %v1306 = vpop.f32.mrf.mxu0
        %v1307 = vpop.f32.mrf.mxu0
        %v1308 = vadd.f32 %v1046, %v1307
        %v1309 = vpop.f32.mrf.mxu0
        %1310 = vmatprep.mubr.bf16.mxu0 0
        %1311 = vmatmul.mubr.bf16.gmra.mxu0 %v1155
        %v1312 = vpop.f32.mrf.mxu0
        %v1313 = vadd.f32 %v1051, %v1312
        %v1314 = vpop.f32.mrf.mxu0
        %v1315 = vpop.f32.mrf.mxu0
        %v1316 = vadd.f32 %v1056, %v1315
        %v1317 = vpop.f32.mrf.mxu0
        %1318 = vmatprep.mubr.bf16.mxu0 0
        %1319 = vmatmul.mubr.bf16.gmra.mxu0 %v1156
        %v1320 = vpop.f32.mrf.mxu0
        %v1321 = vadd.f32 %v1061, %v1320
        %v1322 = vpop.f32.mrf.mxu0
        %v1323 = vpop.f32.mrf.mxu0
        %v1324 = vadd.f32 %v1066, %v1323
        %v1325 = vpop.f32.mrf.mxu0
        %1326 = vmatprep.mubr.bf16.mxu0 0
        %1327 = vmatmul.mubr.bf16.gmra.mxu0 %v1157
        %v1328 = vpop.f32.mrf.mxu0
        %v1329 = vadd.f32 %v1071, %v1328
        %v1330 = vpop.f32.mrf.mxu0
        %v1331 = vpop.f32.mrf.mxu0
        %v1332 = vadd.f32 %v1076, %v1331
        %v1333 = vpop.f32.mrf.mxu0
        %1334 = vdwg.mxu0
        %v1335 = vxor.u32 %v1209, 2147483648
        %v1336 = vxor.u32 %v1212, 2147483648
        %v1337 = vxor.u32 %v1217, 2147483648
        %v1338 = vxor.u32 %v1220, 2147483648
        %v1339 = vxor.u32 %v1225, 2147483648
        %v1340 = vxor.u32 %v1228, 2147483648
        %v1341 = vxor.u32 %v1233, 2147483648
        %v1342 = vxor.u32 %v1236, 2147483648
        %v1343 = vxor.u32 %v1241, 2147483648
        %v1344 = vxor.u32 %v1244, 2147483648
        %v1345 = vxor.u32 %v1249, 2147483648
        %v1346 = vxor.u32 %v1252, 2147483648
        %v1347 = vxor.u32 %v1257, 2147483648
        %v1348 = vxor.u32 %v1260, 2147483648
        %v1349 = vxor.u32 %v1265, 2147483648
        %v1350 = vxor.u32 %v1268, 2147483648
        %v1351 = vmul.f32 %v1335, 1.442695
        %v1352 = vpow.pop %v1351
        %v1353 = vmul.f32 %v1336, 1.442695
        %v1354 = vpow.pop %v1353
        %v1355 = vmul.f32 %v1337, 1.442695
        %v1356 = vpow.pop %v1355
        %v1357 = vmul.f32 %v1338, 1.442695
        %v1358 = vpow.pop %v1357
        %v1359 = vmul.f32 %v1339, 1.442695
        %v1360 = vpow.pop %v1359
        %v1361 = vmul.f32 %v1340, 1.442695
        %v1362 = vpow.pop %v1361
        %v1363 = vmul.f32 %v1341, 1.442695
        %v1364 = vpow.pop %v1363
        %v1365 = vmul.f32 %v1342, 1.442695
        %v1366 = vpow.pop %v1365
        %v1367 = vmul.f32 %v1343, 1.442695
        %v1368 = vpow.pop %v1367
        %v1369 = vmul.f32 %v1344, 1.442695
        %v1370 = vpow.pop %v1369
        %v1371 = vmul.f32 %v1345, 1.442695
        %v1372 = vpow.pop %v1371
        %v1373 = vmul.f32 %v1346, 1.442695
        %v1374 = vpow.pop %v1373
        %v1375 = vmul.f32 %v1347, 1.442695
        %v1376 = vpow.pop %v1375
        %v1377 = vmul.f32 %v1348, 1.442695
        %v1378 = vpow.pop %v1377
        %v1379 = vmul.f32 %v1349, 1.442695
        %v1380 = vpow.pop %v1379
        %v1381 = vmul.f32 %v1350, 1.442695
        %v1382 = vpow.pop %v1381
        %v1383 = vadd.f32 %v1352, 1.0
        %v1384 = vadd.f32 %v1354, 1.0
        %v1385 = vadd.f32 %v1356, 1.0
        %v1386 = vadd.f32 %v1358, 1.0
        %v1387 = vadd.f32 %v1360, 1.0
        %v1388 = vadd.f32 %v1362, 1.0
        %v1389 = vadd.f32 %v1364, 1.0
        %v1390 = vadd.f32 %v1366, 1.0
        %v1391 = vadd.f32 %v1368, 1.0
        %v1392 = vadd.f32 %v1370, 1.0
        %v1393 = vadd.f32 %v1372, 1.0
        %v1394 = vadd.f32 %v1374, 1.0
        %v1395 = vadd.f32 %v1376, 1.0
        %v1396 = vadd.f32 %v1378, 1.0
        %v1397 = vadd.f32 %v1380, 1.0
        %v1398 = vadd.f32 %v1382, 1.0
        %v1399 = vrcp.pop %v1383
        %v1400 = vmul.f32 1.0, %v1399
        %v1401 = vrcp.pop %v1384
        %v1402 = vmul.f32 1.0, %v1401
        %v1403 = vrcp.pop %v1385
        %v1404 = vmul.f32 1.0, %v1403
        %v1405 = vrcp.pop %v1386
        %v1406 = vmul.f32 1.0, %v1405
        %v1407 = vrcp.pop %v1387
        %v1408 = vmul.f32 1.0, %v1407
        %v1409 = vrcp.pop %v1388
        %v1410 = vmul.f32 1.0, %v1409
        %v1411 = vrcp.pop %v1389
        %v1412 = vmul.f32 1.0, %v1411
        %v1413 = vrcp.pop %v1390
        %v1414 = vmul.f32 1.0, %v1413
        %v1415 = vrcp.pop %v1391
        %v1416 = vmul.f32 1.0, %v1415
        %v1417 = vrcp.pop %v1392
        %v1418 = vmul.f32 1.0, %v1417
        %v1419 = vrcp.pop %v1393
        %v1420 = vmul.f32 1.0, %v1419
        %v1421 = vrcp.pop %v1394
        %v1422 = vmul.f32 1.0, %v1421
        %v1423 = vrcp.pop %v1395
        %v1424 = vmul.f32 1.0, %v1423
        %v1425 = vrcp.pop %v1396
        %v1426 = vmul.f32 1.0, %v1425
        %v1427 = vrcp.pop %v1397
        %v1428 = vmul.f32 1.0, %v1427
        %v1429 = vrcp.pop %v1398
        %v1430 = vmul.f32 1.0, %v1429
        %v1431 = vsub.f32 %v1273, %v828
        %v1432 = vsub.f32 %v1276, %v829
        %v1433 = vsub.f32 %v1281, %v830
        %v1434 = vsub.f32 %v1284, %v831
        %v1435 = vsub.f32 %v1289, %v832
        %v1436 = vsub.f32 %v1292, %v833
        %v1437 = vsub.f32 %v1297, %v834
        %v1438 = vsub.f32 %v1300, %v835
        %v1439 = vsub.f32 %v1305, %v836
        %v1440 = vsub.f32 %v1308, %v837
        %v1441 = vsub.f32 %v1313, %v838
        %v1442 = vsub.f32 %v1316, %v839
        %v1443 = vsub.f32 %v1321, %v840
        %v1444 = vsub.f32 %v1324, %v841
        %v1445 = vsub.f32 %v1329, %v842
        %v1446 = vsub.f32 %v1332, %v843
        %v1447 = vmul.f32 %v1400, %v1431
        %v1448 = vmul.f32 %v1402, %v1432
        %v1449 = vmul.f32 %v1404, %v1433
        %v1450 = vmul.f32 %v1406, %v1434
        %v1451 = vmul.f32 %v1408, %v1435
        %v1452 = vmul.f32 %v1410, %v1436
        %v1453 = vmul.f32 %v1412, %v1437
        %v1454 = vmul.f32 %v1414, %v1438
        %v1455 = vmul.f32 %v1416, %v1439
        %v1456 = vmul.f32 %v1418, %v1440
        %v1457 = vmul.f32 %v1420, %v1441
        %v1458 = vmul.f32 %v1422, %v1442
        %v1459 = vmul.f32 %v1424, %v1443
        %v1460 = vmul.f32 %v1426, %v1444
        %v1461 = vmul.f32 %v1428, %v1445
        %v1462 = vmul.f32 %v1430, %v1446
        %v1463 = vadd.f32 %v1447, %v828
        %v1464 = vadd.f32 %v1448, %v829
        %v1465 = vadd.f32 %v1449, %v830
        %v1466 = vadd.f32 %v1450, %v831
        %v1467 = vadd.f32 %v1451, %v832
        %v1468 = vadd.f32 %v1452, %v833
        %v1469 = vadd.f32 %v1453, %v834
        %v1470 = vadd.f32 %v1454, %v835
        %v1471 = vadd.f32 %v1455, %v836
        %v1472 = vadd.f32 %v1456, %v837
        %v1473 = vadd.f32 %v1457, %v838
        %v1474 = vadd.f32 %v1458, %v839
        %v1475 = vadd.f32 %v1459, %v840
        %v1476 = vadd.f32 %v1460, %v841
        %v1477 = vadd.f32 %v1461, %v842
        %v1478 = vadd.f32 %v1462, %v843
        %1479 = vst [vmem:[%s185] sm:$0xff] %v1463
        %1480 = vst [vmem:[%s185 + $0x8] sm:$0xff] %v1464
        %1481 = vst [vmem:[%s185 + $0x10] sm:$0xff] %v1465
        %1482 = vst [vmem:[%s185 + $0x18] sm:$0xff] %v1466
        %1483 = vst [vmem:[%s185 + $0x20] sm:$0xff] %v1467
        %1484 = vst [vmem:[%s185 + $0x28] sm:$0xff] %v1468
        %1485 = vst [vmem:[%s185 + $0x30] sm:$0xff] %v1469
        %1486 = vst [vmem:[%s185 + $0x38] sm:$0xff] %v1470
        %1487 = vst [vmem:[%s185 + $0x40] sm:$0xff] %v1471
        %1488 = vst [vmem:[%s185 + $0x48] sm:$0xff] %v1472
        %1489 = vst [vmem:[%s185 + $0x50] sm:$0xff] %v1473
        %1490 = vst [vmem:[%s185 + $0x58] sm:$0xff] %v1474
        %1491 = vst [vmem:[%s185 + $0x60] sm:$0xff] %v1475
        %1492 = vst [vmem:[%s185 + $0x68] sm:$0xff] %v1476
        %1493 = vst [vmem:[%s185 + $0x70] sm:$0xff] %v1477
        %1494 = vst [vmem:[%s185 + $0x78] sm:$0xff] %v1478
        %s1495 = sand.u32 %s109, 1
        %s1496 = scalar_lea.sflag [#allocation3], %s1495
        %s1497 = sand.u32 %s109, 1
        %s1498 = smul.addr %s1497, 128
        %s1499 = scalar_lea.vmem [#allocation2], %s1498
        // Predicated region
        $region33: #{tpu_custom_call.1} parent=31 // pred_check
          %p1500 = pneg %p119
        $region34: #{tpu_custom_call.1} parent=31 // pred_check_branch
          %1502 = sbr.rel (%p1500) target = $region36
        $region35: #{tpu_custom_call.1} parent=31 // pred_region
          %s1504 = ssub.s32 2048, 2048
          %1505 = vsyncadd %s1496, %s1504
          %s1506 = smul.addr %s21, 16
          %s1507 = sadd.s32 %s22, %s1506
          %s1508 = smul.addr %s1507, 128
          %s1509 = scalar_lea.hbm %s3, %s1508
          %s1510 = sshll.u32 %s1499, 4
          %s1511 = int_to_ptr.vmem [resolvable:$true] %s1510
          %1516 = dma.vmem_to_hbm [thread:$0]  %s1511, 2048, %s1509, %s1496, 128, 128, 8
        $region36: #{tpu_custom_call.1} parent=31 // pred_fallthru
          _
      $region32: #{tpu_custom_call.1} parent=5 // pred_fallthru
        _
      %p1517 = scmp.le.s32.totalorder 2, %s12
      // Predicated region
      $region37: #{tpu_custom_call.1} parent=5 // pred_check
        %p1518 = pneg %p1517
      $region38: #{tpu_custom_call.1} parent=5 // pred_check_branch
        %1520 = sbr.rel (%p1518) target = $region40
      $region39: #{tpu_custom_call.1} parent=5 // pred_region
        %s1521 = ssub.s32 %s12, 2
        // Predicated region
        $region41: #{tpu_custom_call.1} parent=39 // pred_check
          %p1522 = pneg %p125
        $region42: #{tpu_custom_call.1} parent=39 // pred_check_branch
          %1524 = sbr.rel (%p1522) target = $region44
        $region43: #{tpu_custom_call.1} parent=39 // pred_region
          %s1525 = sand.u32 %s110, 1
          %s1526 = scalar_lea.sflag [#allocation3], %s1525
          %s1527 = sand.u32 %s110, 1
          %s1528 = smul.addr %s1527, 128
          %s1529 = scalar_lea.vmem [#allocation2], %s1528
          %1530 = dma.done %s1526, 2048
        $region44: #{tpu_custom_call.1} parent=39 // pred_fallthru
          _
      $region40: #{tpu_custom_call.1} parent=5 // pred_fallthru
        _
    $region6: #{tpu_custom_call.1} parent=1 // loop_footer
      %s16 = sadd.s32 1, %s12
    $region7: #{tpu_custom_call.1} parent=1 // loop_footer_branch
      %11 = sbr.rel target = $region3
    $region8: #{tpu_custom_call.1} parent=1 // loop_exit
      _
    %1531 = vsyncpa [#allocation3], 1
    %s1532 = scalar_lea.sflag [#allocation3], 1
    %1533 = vsyncpa %s1532, 1

</llo_original>
